<compile_context>
chip_gen: v5e
topology: v5e:2x2
jax: 0.10.0
libtpu: 0.0.40
codegen_flags: <defaults>
</compile_context>

<pallas_src>
import functools
import math

import jax
import jax.numpy as jnp
from jax.experimental import pallas as pl
from jax.experimental.pallas import tpu as pltpu

_INV_SQRT2 = 0.7071067811865476  # 1/sqrt(2): exact erf GELU as a multiply


def _gelu_exact_f32(x):
    # PyTorch nn.GELU() default = exact erf-based GELU (computed in f32).
    return 0.5 * x * (1.0 + jax.lax.erf(x * _INV_SQRT2))


def _gelu_tanh_f32(x):
    # Optional approximation: tanh runs on the EUP (separate bundle slot).
    return jax.nn.gelu(x, approximate=True)


def _round_up(x, m):
    return ((x + m - 1) // m) * m


def _largest_divisor_mult128(n, upper):
    """Largest multiple of 128 dividing n (n a multiple of 128), <= upper."""
    upper = max(128, min(upper, n))
    best = 128
    d = 128
    while d <= upper:
        if n % d == 0:
            best = d
        d += 128
    return best


def _vmem_capacity_bytes():
    """Physical VMEM per TensorCore (with fallbacks if the query fails)."""
    try:
        cap = int(pltpu.get_tpu_info().vmem_capacity_bytes)
        if cap > 0:
            return cap
    except Exception:
        pass
    try:
        kind = jax.devices()[0].device_kind.lower()
    except Exception:
        kind = ""
    if "v7" in kind:
        return 64 * 1024 * 1024        # v7x: 64 MiB per TensorCore
    return 128 * 1024 * 1024           # v5e / v6e


# --------------------------------------------------------------------------
# Kernels
# --------------------------------------------------------------------------
def _ff_resident_kernel(x_ref, w1_ref, b1_ref, w2_ref, b2_ref, o_ref, *,
                        gelu_fn):
    """Weights fully VMEM-resident; grid = (token tiles,)."""
    h = jnp.dot(x_ref[...], w1_ref[...], preferred_element_type=jnp.float32)
    h = gelu_fn(h + b1_ref[...])
    out = jnp.dot(h.astype(w2_ref.dtype), w2_ref[...],
                  preferred_element_type=jnp.float32)
    o_ref[...] = (out + b2_ref[...]).astype(o_ref.dtype)


def _ff_streamed_kernel(x_ref, w1_ref, b1_ref, w2_ref, b2_ref, o_ref, acc_ref,
                        *, gelu_fn):
    """Inner dim streamed as a trailing reduction; grid = (token tiles, k)."""
    k = pl.program_id(1)

    @pl.when(k == 0)
    def _():
        acc_ref[...] = jnp.zeros_like(acc_ref)

    h = jnp.dot(x_ref[...], w1_ref[...], preferred_element_type=jnp.float32)
    h = gelu_fn(h + b1_ref[...])
    acc_ref[...] += jnp.dot(h.astype(w2_ref.dtype), w2_ref[...],
                            preferred_element_type=jnp.float32)

    @pl.when(k == pl.num_programs(1) - 1)
    def _():
        o_ref[...] = (acc_ref[...] + b2_ref[...]).astype(o_ref.dtype)


# --------------------------------------------------------------------------
# Host-side wrappers
# --------------------------------------------------------------------------
def prepare_feedforward_params(w1, b1, w2, b2, *, compute_dtype=jnp.bfloat16):
    """Pad (to 128-multiples) and cast the weights ONCE, outside the forward."""
    dim, inner = w1.shape
    dim_out = w2.shape[1]
    dim_pad = _round_up(dim, 128)
    inner_pad = _round_up(inner, 128)
    dim_out_pad = _round_up(dim_out, 128)

    w1p = jnp.pad(w1, ((0, dim_pad - dim), (0, inner_pad - inner)))
    w2p = jnp.pad(w2, ((0, inner_pad - inner), (0, dim_out_pad - dim_out)))
    b1p = jnp.pad(b1.reshape(1, inner), ((0, 0), (0, inner_pad - inner)))
    b2p = jnp.pad(b2.reshape(1, dim_out), ((0, 0), (0, dim_out_pad - dim_out)))

    return {
        "w1": w1p.astype(compute_dtype),
        "b1": b1p.astype(jnp.float32),
        "w2": w2p.astype(compute_dtype),
        "b2": b2p.astype(jnp.float32),
        "dim": dim, "inner": inner, "dim_out": dim_out,
        "compute_dtype": jnp.dtype(compute_dtype),
    }


def feedforward(x, params, *, tm=None, tk=None, weight_resident=None,
                approximate_gelu=False, vmem_budget_bytes=None):
    """x: (..., dim) -> (..., dim_out). Fused Linear + GELU + Linear."""
    w1p, b1p, w2p, b2p = params["w1"], params["b1"], params["w2"], params["b2"]
    dim, inner, dim_out = params["dim"], params["inner"], params["dim_out"]
    cdt = params["compute_dtype"]

    assert x.shape[-1] == dim, (x.shape, dim)
    lead_shape = x.shape[:-1]
    M = int(math.prod(lead_shape)) if lead_shape else 1

    dim_pad, inner_pad = w1p.shape
    dim_out_pad = w2p.shape[1]
    out_dtype = x.dtype

    cdt_it = jnp.dtype(cdt).itemsize
    out_it = jnp.dtype(out_dtype).itemsize

    budget = vmem_budget_bytes
    if budget is None:
        # Leave headroom for compiler scratch: ~96 MiB on v5e/v6e, ~48 on v7x.
        budget = (_vmem_capacity_bytes() * 3) // 4

    # ---- token tile: 128-aligned; >=2 tiles when possible (v7x dual TC) ----
    M_pad128 = _round_up(max(M, 1), 128)
    tm_eff = min(_round_up(tm if tm is not None else 512, 128), M_pad128)
    if M_pad128 >= 256 and M_pad128 // tm_eff < 2:
        tm_eff = _round_up(M_pad128 // 2, 128)

    # ---- double-buffered VMEM requirement of the two variants ---------------
    def resident_need(tm_):
        return (2 * tm_ * dim_pad * cdt_it              # x tile
                + 2 * dim_pad * inner_pad * cdt_it      # W1 (resident)
                + 2 * inner_pad * 4                     # b1
                + 2 * inner_pad * dim_out_pad * cdt_it  # W2 (resident)
                + 2 * dim_out_pad * 4                   # b2
                + 2 * tm_ * dim_out_pad * out_it        # out tile
                + tm_ * inner_pad * (4 + cdt_it))       # hidden temp (f32 + cast)

    def streamed_need(tm_, tk_):
        return (2 * tm_ * dim_pad * cdt_it
                + 2 * dim_pad * tk_ * cdt_it
                + 2 * tk_ * 4
                + 2 * tk_ * dim_out_pad * cdt_it
                + 2 * dim_out_pad * 4
                + 2 * tm_ * dim_out_pad * out_it
                + tm_ * dim_out_pad * 4                 # f32 accumulator scratch
                + tm_ * tk_ * (4 + cdt_it))             # hidden temp

    use_resident = weight_resident
    if use_resident is None:
        use_resident = resident_need(tm_eff) <= budget

    tk_eff = None
    if use_resident:
        while resident_need(tm_eff) > budget and tm_eff > 128:
            tm_eff = max(128, _round_up(tm_eff // 2, 128))
        need = resident_need(tm_eff)
    else:
        # tk divides round_up(inner, 128): no all-zero tail blocks.
        tk_eff = _largest_divisor_mult128(
            inner_pad, _round_up(tk if tk is not None else 2048, 128))
        while streamed_need(tm_eff, tk_eff) > budget and (tm_eff > 128
                                                          or tk_eff > 128):
            if tm_eff >= tk_eff and tm_eff > 128:
                tm_eff = max(128, _round_up(tm_eff // 2, 128))
            elif tk_eff > 128:
                tk_eff = _largest_divisor_mult128(inner_pad,
                                                  max(128, tk_eff // 2))
            else:
                break
        need = streamed_need(tm_eff, tk_eff)

    M_pad = _round_up(max(M, 1), tm_eff)

    # ---- per-call activation pad / cast (only the activations) -------------
    x2 = x.reshape(M, dim)
    if M_pad != M or dim_pad != dim:
        x2 = jnp.pad(x2, ((0, M_pad - M), (0, dim_pad - dim)))
    x2 = x2.astype(cdt)

    gelu_fn = _gelu_tanh_f32 if approximate_gelu else _gelu_exact_f32

    cost = pl.CostEstimate(
        flops=(2 * M_pad * dim_pad * inner_pad
               + 2 * M_pad * inner_pad * dim_out_pad),
        transcendentals=M_pad * inner_pad,
        bytes_accessed=(x2.size * x2.dtype.itemsize
                        + w1p.size * w1p.dtype.itemsize + b1p.size * 4
                        + w2p.size * w2p.dtype.itemsize + b2p.size * 4
                        + M_pad * dim_out_pad * out_it))

    # Never request more than the generation-aware budget (v7x-safe); never
    # less than the default scoped limit.
    vmem_limit = int(max(32 * 1024 * 1024, min(budget, need + (8 << 20))))

    if use_resident:
        grid_spec = pltpu.PrefetchScalarGridSpec(
            num_scalar_prefetch=0,
            grid=(M_pad // tm_eff,),
            in_specs=[
                pl.BlockSpec((tm_eff, dim_pad), lambda i: (i, 0)),       # x
                pl.BlockSpec((dim_pad, inner_pad), lambda i: (0, 0)),    # W1
                pl.BlockSpec((1, inner_pad), lambda i: (0, 0)),          # b1
                pl.BlockSpec((inner_pad, dim_out_pad), lambda i: (0, 0)),# W2
                pl.BlockSpec((1, dim_out_pad), lambda i: (0, 0)),        # b2
            ],
            out_specs=pl.BlockSpec((tm_eff, dim_out_pad), lambda i: (i, 0)),
        )
        kernel = functools.partial(_ff_resident_kernel, gelu_fn=gelu_fn)
        dim_sem = ("parallel",)
    else:
        grid_spec = pltpu.PrefetchScalarGridSpec(
            num_scalar_prefetch=0,
            grid=(M_pad // tm_eff, inner_pad // tk_eff),
            in_specs=[
                pl.BlockSpec((tm_eff, dim_pad), lambda i, k: (i, 0)),        # x
                pl.BlockSpec((dim_pad, tk_eff), lambda i, k: (0, k)),        # W1
                pl.BlockSpec((1, tk_eff), lambda i, k: (0, k)),              # b1
                pl.BlockSpec((tk_eff, dim_out_pad), lambda i, k: (k, 0)),    # W2
                pl.BlockSpec((1, dim_out_pad), lambda i, k: (0, 0)),         # b2
            ],
            out_specs=pl.BlockSpec((tm_eff, dim_out_pad), lambda i, k: (i, 0)),
            scratch_shapes=[pltpu.VMEM((tm_eff, dim_out_pad), jnp.float32)],
        )
        kernel = functools.partial(_ff_streamed_kernel, gelu_fn=gelu_fn)
        dim_sem = ("parallel", "arbitrary")

    out = pl.pallas_call(
        kernel,
        out_shape=jax.ShapeDtypeStruct((M_pad, dim_out_pad), out_dtype),
        grid_spec=grid_spec,
        compiler_params=pltpu.CompilerParams(
            dimension_semantics=dim_sem,
            vmem_limit_bytes=vmem_limit,
        ),
        cost_estimate=cost,
    )(x2, w1p, b1p, w2p, b2p)

    return out[:M, :dim_out].reshape(*lead_shape, dim_out)


# --------------------------------------------------------------------------
# Reference & init (torch.nn.Linear-style)
# --------------------------------------------------------------------------
def init_feedforward_params(key, dim, dim_out=None, mult=4, dtype=jnp.float32):
    inner_dim = int(dim * mult)
    dim_out = dim if dim_out is None else dim_out
    k1, k2, k3, k4 = jax.random.split(key, 4)
    bound1 = 1.0 / (dim ** 0.5)
    bound2 = 1.0 / (inner_dim ** 0.5)
    w1 = jax.random.uniform(k1, (dim, inner_dim), dtype, -bound1, bound1)
    b1 = jax.random.uniform(k2, (inner_dim,), dtype, -bound1, bound1)
    w2 = jax.random.uniform(k3, (inner_dim, dim_out), dtype, -bound2, bound2)
    b2 = jax.random.uniform(k4, (dim_out,), dtype, -bound2, bound2)
    return w1, b1, w2, b2


def feedforward_ref(x, w1, b1, w2, b2):
    h = _gelu_exact_f32(x @ w1 + b1)
    return h @ w2 + b2


if __name__ == "__main__":
    key = jax.random.PRNGKey(0)
    kx1, kp1, kx2, kp2 = jax.random.split(key, 4)

    # --- Test 1: module-default shapes (batch=2, seq=8, dim=32, mult=4) -----
    B, S, dim, mult = 2, 8, 32, 4
    x = jax.random.normal(kx1, (B, S, dim), dtype=jnp.float32)
    w1, b1, w2, b2 = init_feedforward_params(kp1, dim, dim_out=None, mult=mult)
    ref = feedforward_ref(x, w1, b1, w2, b2)

    # Fast path: bf16 MXU operands, f32 accumulation, weight-resident kernel.
    params_bf16 = prepare_feedforward_params(w1, b1, w2, b2,
                                             compute_dtype=jnp.bfloat16)
    out_fast = jax.block_until_ready(feedforward(x, params_bf16))
    assert out_fast.shape == (B, S, dim)
    assert jnp.allclose(out_fast, ref, atol=5e-2, rtol=5e-2)

    # f32 operands: tighter parity with the f32 reference.
    params_f32 = prepare_feedforward_params(w1, b1, w2, b2,
                                            compute_dtype=jnp.float32)
    out_f32 = jax.block_until_ready(feedforward(x, params_f32))
    assert out_f32.shape == (B, S, dim)
    assert jnp.allclose(out_f32, ref, atol=2e-2, rtol=2e-2)

    # --- Test 2: ragged shapes + forced streamed (k-reduction) path ---------
    B2, S2, dim2, mult2 = 2, 40, 96, 4
    x2 = jax.random.normal(kx2, (B2, S2, dim2), dtype=jnp.float32)
    w1b, b1b, w2b, b2b = init_feedforward_params(kp2, dim2, dim_out=None,
                                                 mult=mult2)
    ref2 = feedforward_ref(x2, w1b, b1b, w2b, b2b)
    params2 = prepare_feedforward_params(w1b, b1b, w2b, b2b,
                                         compute_dtype=jnp.float32)
    out2 = jax.block_until_ready(
        feedforward(x2, params2, weight_resident=False, tk=128))
    assert out2.shape == (B2, S2, dim2)
    assert jnp.allclose(out2, ref2, atol=2e-2, rtol=2e-2)

    print("KERNEL_OK")
</pallas_src>

<mosaic_0001>
module attributes {stable_mosaic.version = 11 : i64} {
  func.func @_ff_resident_kernel(%arg0: i32, %arg1: memref<128x128xbf16, #tpu.memory_space<vmem>>, %arg2: memref<128x128xbf16, #tpu.memory_space<vmem>>, %arg3: memref<1x128xf32, #tpu.memory_space<vmem>>, %arg4: memref<128x128xbf16, #tpu.memory_space<vmem>>, %arg5: memref<1x128xf32, #tpu.memory_space<vmem>>, %arg6: memref<128x128xf32, #tpu.memory_space<vmem>>) attributes {dimension_semantics = [#tpu.dimension_semantics<parallel>], iteration_bounds = array<i64: 1>, scalar_prefetch = 0 : i64, scratch_operands = 0 : i64, tpu.core_type = #tpu.core_type<tc>, window_params = [{transform_indices = @transform_0, window_bounds = array<i64: 128, 128>}, {pipeline_mode = #tpu.pipeline_mode<synchronous>, transform_indices = @transform_1, window_bounds = array<i64: 128, 128>}, {pipeline_mode = #tpu.pipeline_mode<synchronous>, transform_indices = @transform_2, window_bounds = array<i64: 1, 128>}, {pipeline_mode = #tpu.pipeline_mode<synchronous>, transform_indices = @transform_3, window_bounds = array<i64: 128, 128>}, {pipeline_mode = #tpu.pipeline_mode<synchronous>, transform_indices = @transform_4, window_bounds = array<i64: 1, 128>}, {transform_indices = @transform_5, window_bounds = array<i64: 128, 128>}]} {
    %c0 = arith.constant 0 : index
    %c0_0 = arith.constant 0 : index
    %0 = vector.load %arg1[%c0, %c0_0] : memref<128x128xbf16, #tpu.memory_space<vmem>>, vector<128x128xbf16>
    %c0_1 = arith.constant 0 : index
    %c0_2 = arith.constant 0 : index
    %1 = vector.load %arg2[%c0_1, %c0_2] : memref<128x128xbf16, #tpu.memory_space<vmem>>, vector<128x128xbf16>
    %cst = arith.constant dense<0.000000e+00> : vector<128x128xf32>
    %2 = tpu.matmul %0, %1, %cst {dimension_numbers = #tpu.dot_dimension_numbers<[1], [0], [0], [1], [0, 0, 1, 1], [], []>} : vector<128x128xbf16>, vector<128x128xbf16>, vector<128x128xf32> -> vector<128x128xf32>
    %c0_3 = arith.constant 0 : index
    %c0_4 = arith.constant 0 : index
    %3 = vector.load %arg3[%c0_3, %c0_4] : memref<1x128xf32, #tpu.memory_space<vmem>>, vector<1x128xf32>
    %4 = vector.broadcast %3 : vector<1x128xf32> to vector<128x128xf32>
    %5 = arith.addf %2, %4 : vector<128x128xf32>
    %cst_5 = arith.constant 5.000000e-01 : f32
    %6 = vector.broadcast %cst_5 : f32 to vector<128x128xf32>
    %7 = arith.mulf %6, %5 : vector<128x128xf32>
    %cst_6 = arith.constant 0.707106769 : f32
    %8 = vector.broadcast %cst_6 : f32 to vector<128x128xf32>
    %9 = arith.mulf %5, %8 : vector<128x128xf32>
    %10 = math.erf %9 : vector<128x128xf32>
    %cst_7 = arith.constant 1.000000e+00 : f32
    %11 = vector.broadcast %cst_7 : f32 to vector<128x128xf32>
    %12 = arith.addf %11, %10 : vector<128x128xf32>
    %13 = arith.mulf %7, %12 : vector<128x128xf32>
    %14 = arith.truncf %13 : vector<128x128xf32> to vector<128x128xbf16>
    %c0_8 = arith.constant 0 : index
    %c0_9 = arith.constant 0 : index
    %15 = vector.load %arg4[%c0_8, %c0_9] : memref<128x128xbf16, #tpu.memory_space<vmem>>, vector<128x128xbf16>
    %cst_10 = arith.constant dense<0.000000e+00> : vector<128x128xf32>
    %16 = tpu.matmul %14, %15, %cst_10 {dimension_numbers = #tpu.dot_dimension_numbers<[1], [0], [0], [1], [0, 0, 1, 1], [], []>} : vector<128x128xbf16>, vector<128x128xbf16>, vector<128x128xf32> -> vector<128x128xf32>
    %c0_11 = arith.constant 0 : index
    %c0_12 = arith.constant 0 : index
    %17 = vector.load %arg5[%c0_11, %c0_12] : memref<1x128xf32, #tpu.memory_space<vmem>>, vector<1x128xf32>
    %18 = vector.broadcast %17 : vector<1x128xf32> to vector<128x128xf32>
    %19 = arith.addf %16, %18 : vector<128x128xf32>
    %c0_13 = arith.constant 0 : index
    %c0_14 = arith.constant 0 : index
    %20 = vector.load %arg6[%c0_13, %c0_14] : memref<128x128xf32, #tpu.memory_space<vmem>>, vector<128x128xf32>
    tpu.vector_store %arg6[%c0_13, %c0_14], %19 {strides = array<i32>} : memref<128x128xf32, #tpu.memory_space<vmem>>, vector<128x128xf32>,
    return
  }
  func.func @transform_0(%arg0: i32) -> (i32, i32) {
    %c0_i32 = arith.constant 0 : i32
    %c0_i32_0 = arith.constant 0 : i32
    return %arg0, %c0_i32 : i32, i32
  }
  func.func @transform_1(%arg0: i32) -> (i32, i32) {
    %c0_i32 = arith.constant 0 : i32
    %c0_i32_0 = arith.constant 0 : i32
    %c0_i32_1 = arith.constant 0 : i32
    return %c0_i32, %c0_i32_0 : i32, i32
  }
  func.func @transform_2(%arg0: i32) -> (i32, i32) {
    %c0_i32 = arith.constant 0 : i32
    %c0_i32_0 = arith.constant 0 : i32
    %c0_i32_1 = arith.constant 0 : i32
    return %c0_i32, %c0_i32_0 : i32, i32
  }
  func.func @transform_3(%arg0: i32) -> (i32, i32) {
    %c0_i32 = arith.constant 0 : i32
    %c0_i32_0 = arith.constant 0 : i32
    %c0_i32_1 = arith.constant 0 : i32
    return %c0_i32, %c0_i32_0 : i32, i32
  }
  func.func @transform_4(%arg0: i32) -> (i32, i32) {
    %c0_i32 = arith.constant 0 : i32
    %c0_i32_0 = arith.constant 0 : i32
    %c0_i32_1 = arith.constant 0 : i32
    return %c0_i32, %c0_i32_0 : i32, i32
  }
  func.func @transform_5(%arg0: i32) -> (i32, i32) {
    %c0_i32 = arith.constant 0 : i32
    %c0_i32_0 = arith.constant 0 : i32
    return %arg0, %c0_i32 : i32, i32
  }
}

</mosaic_0001>

<llo_original>
// kernel: tpu_custom_call.1
$region0: #{tpu_custom_call.1}
  #allocation0 [shape = 'u32[]', space=smem, size = 0x4, offset = 0x4, fixed_abs, tag = 'smem constant byte address 0x4 - core index']
  #allocation1 [shape = 'u32[72,128]{1,0:T(1,128)}', space=vmem, size = 0x9000, scoped, tag = 'internal scratch']
  %s0 = inlined_call_operand.hbm [shape: bf16[128,128], index: 0, kind: input, shape index: {}]
  %s1 = inlined_call_operand.hbm [shape: bf16[128,128], index: 1, kind: input, shape index: {}]
  %s2 = inlined_call_operand.vmem [shape: f32[1,128], index: 2, kind: input, shape index: {}]
  %s3 = inlined_call_operand.hbm [shape: bf16[128,128], index: 3, kind: input, shape index: {}]
  %s4 = inlined_call_operand.vmem [shape: f32[1,128], index: 4, kind: input, shape index: {}]
  %s5 = inlined_call_operand.hbm [shape: f32[128,128], index: 5, kind: output, shape index: {}]
  %s6 = sld [smem:[#allocation0]]
  $region42: #{tpu_custom_call.1} parent=0
    _
  %s8 = ssub.s32 1, %s6
  %s9 = scalar_select 0, %s8, %s6
  $region1: #{tpu_custom_call.1} parent=0
    #allocation2 [shape = 'u8[32768]{0}', space=vmem, size = 0x8000, scoped, tag = 'input window, operand 0, single buffered']
    #allocation3 [shape = 's32[1]{0}', space=sflag, size = 0x4, scoped, tag = 'scoped memory for tpu_custom_call.1']
    #allocation4 [shape = 's32[1]{0}', space=sflag, size = 0x4, scoped, tag = 'scoped memory for tpu_custom_call.1']
    #allocation5 [shape = 'u8[32768]{0}', space=vmem, size = 0x8000, scoped, tag = 'input window, operand 1, single buffered']
    #allocation6 [shape = 's32[1]{0}', space=sflag, size = 0x4, scoped, tag = 'scoped memory for tpu_custom_call.1']
    #allocation7 [shape = 'u8[32768]{0}', space=vmem, size = 0x8000, scoped, tag = 'input window, operand 3, single buffered']
    #allocation8 [shape = 'u8[65536]{0}', space=vmem, size = 0x10000, scoped, tag = 'output window, operand 0, single buffered']
    %10 = vsyncpa [#allocation3], 0
    %11 = vsyncpa [#allocation6], 0
    %12 = vsyncpa [#allocation4], 0
    // Predicated region
    $region2: #{tpu_custom_call.1} parent=1 // pred_check
      _
    $region3: #{tpu_custom_call.1} parent=1 // pred_check_branch
      %14 = sbr.rel (0) target = $region5
    $region4: #{tpu_custom_call.1} parent=1 // pred_region
      %16 = vsyncadd [#allocation3], 0
      %s17 = sshll.u32 %s0, 4
      %s18 = int_to_ptr.hbm [resolvable:$true] %s17
      %s19 = sshll.u32 [#allocation2], 4
      %s20 = int_to_ptr.vmem [resolvable:$true] %s19
      %25 = dma.hbm_to_vmem [thread:$0]  %s18, 1024, %s20, [#allocation3], 64, 64, 4
    $region5: #{tpu_custom_call.1} parent=1 // pred_fallthru
      _
    // Predicated region
    $region6: #{tpu_custom_call.1} parent=1 // pred_check
      _
    $region7: #{tpu_custom_call.1} parent=1 // pred_check_branch
      %27 = sbr.rel (0) target = $region9
    $region8: #{tpu_custom_call.1} parent=1 // pred_region
      %29 = vsyncadd [#allocation6], 0
      %s30 = sshll.u32 %s1, 4
      %s31 = int_to_ptr.hbm [resolvable:$true] %s30
      %s32 = sshll.u32 [#allocation5], 4
      %s33 = int_to_ptr.vmem [resolvable:$true] %s32
      %38 = dma.hbm_to_vmem [thread:$0]  %s31, 1024, %s33, [#allocation6], 64, 64, 4
    $region9: #{tpu_custom_call.1} parent=1 // pred_fallthru
      _
    // Predicated region
    $region10: #{tpu_custom_call.1} parent=1 // pred_check
      _
    $region11: #{tpu_custom_call.1} parent=1 // pred_check_branch
      %40 = sbr.rel (0) target = $region13
    $region12: #{tpu_custom_call.1} parent=1 // pred_region
      _
    $region13: #{tpu_custom_call.1} parent=1 // pred_fallthru
      _
    // Predicated region
    $region14: #{tpu_custom_call.1} parent=1 // pred_check
      _
    $region15: #{tpu_custom_call.1} parent=1 // pred_check_branch
      %42 = sbr.rel (0) target = $region17
    $region16: #{tpu_custom_call.1} parent=1 // pred_region
      %44 = vsyncadd [#allocation6], 0
      %s45 = sshll.u32 %s3, 4
      %s46 = int_to_ptr.hbm [resolvable:$true] %s45
      %s47 = sshll.u32 [#allocation7], 4
      %s48 = int_to_ptr.vmem [resolvable:$true] %s47
      %53 = dma.hbm_to_vmem [thread:$0]  %s46, 1024, %s48, [#allocation6], 64, 64, 4
    $region17: #{tpu_custom_call.1} parent=1 // pred_fallthru
      _
    // Predicated region
    $region18: #{tpu_custom_call.1} parent=1 // pred_check
      _
    $region19: #{tpu_custom_call.1} parent=1 // pred_check_branch
      %55 = sbr.rel (0) target = $region21
    $region20: #{tpu_custom_call.1} parent=1 // pred_region
      _
    $region21: #{tpu_custom_call.1} parent=1 // pred_fallthru
      _
    // Predicated region
    $region22: #{tpu_custom_call.1} parent=1 // pred_check
      _
    $region23: #{tpu_custom_call.1} parent=1 // pred_check_branch
      %57 = sbr.rel (0) target = $region25
    $region24: #{tpu_custom_call.1} parent=1 // pred_region
      %59 = dma.done [#allocation3], 1024
    $region25: #{tpu_custom_call.1} parent=1 // pred_fallthru
      _
    // Predicated region
    $region26: #{tpu_custom_call.1} parent=1 // pred_check
      _
    $region27: #{tpu_custom_call.1} parent=1 // pred_check_branch
      %61 = sbr.rel (0) target = $region29
    $region28: #{tpu_custom_call.1} parent=1 // pred_region
      %63 = dma.done [#allocation6], 1024
    $region29: #{tpu_custom_call.1} parent=1 // pred_fallthru
      _
    // Predicated region
    $region30: #{tpu_custom_call.1} parent=1 // pred_check
      _
    $region31: #{tpu_custom_call.1} parent=1 // pred_check_branch
      %65 = sbr.rel (0) target = $region33
    $region32: #{tpu_custom_call.1} parent=1 // pred_region
      %67 = dma.done [#allocation6], 1024
    $region33: #{tpu_custom_call.1} parent=1 // pred_fallthru
      _
    %v68 = vld [vmem:[#allocation2] sm:$0xf]
    %v69 = vld [vmem:[#allocation2 + $0x4] sm:$0xf]
    %v70 = vld [vmem:[#allocation2 + $0x8] sm:$0xf]
    %v71 = vld [vmem:[#allocation2 + $0xc] sm:$0xf]
    %v72 = vld [vmem:[#allocation2 + $0x10] sm:$0xf]
    %v73 = vld [vmem:[#allocation2 + $0x14] sm:$0xf]
    %v74 = vld [vmem:[#allocation2 + $0x18] sm:$0xf]
    %v75 = vld [vmem:[#allocation2 + $0x1c] sm:$0xf]
    %v76 = vld [vmem:[#allocation2 + $0x20] sm:$0xf]
    %v77 = vld [vmem:[#allocation2 + $0x24] sm:$0xf]
    %v78 = vld [vmem:[#allocation2 + $0x28] sm:$0xf]
    %v79 = vld [vmem:[#allocation2 + $0x2c] sm:$0xf]
    %v80 = vld [vmem:[#allocation2 + $0x30] sm:$0xf]
    %v81 = vld [vmem:[#allocation2 + $0x34] sm:$0xf]
    %v82 = vld [vmem:[#allocation2 + $0x38] sm:$0xf]
    %v83 = vld [vmem:[#allocation2 + $0x3c] sm:$0xf]
    %v84 = vld [vmem:[#allocation5] sm:$0xf]
    %v85 = vld [vmem:[#allocation5 + $0x4] sm:$0xf]
    %v86 = vld [vmem:[#allocation5 + $0x8] sm:$0xf]
    %v87 = vld [vmem:[#allocation5 + $0xc] sm:$0xf]
    %v88 = vld [vmem:[#allocation5 + $0x10] sm:$0xf]
    %v89 = vld [vmem:[#allocation5 + $0x14] sm:$0xf]
    %v90 = vld [vmem:[#allocation5 + $0x18] sm:$0xf]
    %v91 = vld [vmem:[#allocation5 + $0x1c] sm:$0xf]
    %v92 = vld [vmem:[#allocation5 + $0x20] sm:$0xf]
    %v93 = vld [vmem:[#allocation5 + $0x24] sm:$0xf]
    %v94 = vld [vmem:[#allocation5 + $0x28] sm:$0xf]
    %v95 = vld [vmem:[#allocation5 + $0x2c] sm:$0xf]
    %v96 = vld [vmem:[#allocation5 + $0x30] sm:$0xf]
    %v97 = vld [vmem:[#allocation5 + $0x34] sm:$0xf]
    %v98 = vld [vmem:[#allocation5 + $0x38] sm:$0xf]
    %v99 = vld [vmem:[#allocation5 + $0x3c] sm:$0xf]
    %v100 = vld [vmem:[%s2] sm:$0x1]
    %v102 = vperm.slane %v100, 0
    %v120 = vunpack.c.l.b16 %v68
    %v121 = vunpack.c.l.b16 %v69
    %v122 = vunpack.c.l.b16 %v70
    %v123 = vunpack.c.l.b16 %v71
    %v124 = vunpack.c.l.b16 %v72
    %v125 = vunpack.c.l.b16 %v73
    %v126 = vunpack.c.l.b16 %v74
    %v127 = vunpack.c.l.b16 %v75
    %v128 = vunpack.c.l.b16 %v76
    %v129 = vunpack.c.l.b16 %v77
    %v130 = vunpack.c.l.b16 %v78
    %v131 = vunpack.c.l.b16 %v79
    %v132 = vunpack.c.l.b16 %v80
    %v133 = vunpack.c.l.b16 %v81
    %v134 = vunpack.c.l.b16 %v82
    %v135 = vunpack.c.l.b16 %v83
    %v136 = vpack.c.b16 %v121, %v120
    %v137 = vpack.c.b16 %v123, %v122
    %v138 = vpack.c.b16 %v125, %v124
    %v139 = vpack.c.b16 %v127, %v126
    %v140 = vpack.c.b16 %v129, %v128
    %v141 = vpack.c.b16 %v131, %v130
    %v142 = vpack.c.b16 %v133, %v132
    %v143 = vpack.c.b16 %v135, %v134
    %v168 = vunpack.c.l.b16 %v84
    %v169 = vunpack.c.l.b16 %v85
    %v170 = vunpack.c.l.b16 %v86
    %v171 = vunpack.c.l.b16 %v87
    %v172 = vunpack.c.l.b16 %v88
    %v173 = vunpack.c.l.b16 %v89
    %v174 = vunpack.c.l.b16 %v90
    %v175 = vunpack.c.l.b16 %v91
    %v176 = vunpack.c.l.b16 %v92
    %v177 = vunpack.c.l.b16 %v93
    %v178 = vunpack.c.l.b16 %v94
    %v179 = vunpack.c.l.b16 %v95
    %v180 = vunpack.c.l.b16 %v96
    %v181 = vunpack.c.l.b16 %v97
    %v182 = vunpack.c.l.b16 %v98
    %v183 = vunpack.c.l.b16 %v99
    %v184 = vpack.c.b16 %v169, %v168
    %v185 = vpack.c.b16 %v171, %v170
    %v186 = vpack.c.b16 %v173, %v172
    %v187 = vpack.c.b16 %v175, %v174
    %v188 = vpack.c.b16 %v177, %v176
    %v189 = vpack.c.b16 %v179, %v178
    %v190 = vpack.c.b16 %v181, %v180
    %v191 = vpack.c.b16 %v183, %v182
    %200 = vmatpush.bf16.msra.mxu0 %v191
    %201 = vmatpush.bf16.msra.mxu0 %v190
    %202 = vmatpush.bf16.msra.mxu0 %v189
    %203 = vmatpush.bf16.msra.mxu0 %v188
    %204 = vmatpush.bf16.msra.mxu0 %v187
    %205 = vmatpush.bf16.msra.mxu0 %v186
    %206 = vmatpush.bf16.msra.mxu0 %v185
    %207 = vmatpush.bf16.msra.mxu0 %v184
    %208 = vmatmul.bf16.gmra.mxu0 %v136
    %v209 = vpop.f32.mrf.mxu0
    %v210 = vadd.f32 %v102, %v209
    %v211 = vpop.f32.mrf.mxu0
    %v212 = vadd.f32 %v102, %v211
    %213 = vmatmul.bf16.gmra.mxu0 %v137
    %v214 = vpop.f32.mrf.mxu0
    %v215 = vadd.f32 %v102, %v214
    %v216 = vpop.f32.mrf.mxu0
    %v217 = vadd.f32 %v102, %v216
    %218 = vmatmul.bf16.gmra.mxu0 %v138
    %v219 = vpop.f32.mrf.mxu0
    %v220 = vadd.f32 %v102, %v219
    %v221 = vpop.f32.mrf.mxu0
    %v222 = vadd.f32 %v102, %v221
    %223 = vmatmul.bf16.gmra.mxu0 %v139
    %v224 = vpop.f32.mrf.mxu0
    %v225 = vadd.f32 %v102, %v224
    %v226 = vpop.f32.mrf.mxu0
    %v227 = vadd.f32 %v102, %v226
    %228 = vmatmul.bf16.gmra.mxu0 %v140
    %v229 = vpop.f32.mrf.mxu0
    %v230 = vadd.f32 %v102, %v229
    %v231 = vpop.f32.mrf.mxu0
    %v232 = vadd.f32 %v102, %v231
    %233 = vmatmul.bf16.gmra.mxu0 %v141
    %v234 = vpop.f32.mrf.mxu0
    %v235 = vadd.f32 %v102, %v234
    %v236 = vpop.f32.mrf.mxu0
    %v237 = vadd.f32 %v102, %v236
    %238 = vmatmul.bf16.gmra.mxu0 %v142
    %v239 = vpop.f32.mrf.mxu0
    %v240 = vadd.f32 %v102, %v239
    %v241 = vpop.f32.mrf.mxu0
    %v242 = vadd.f32 %v102, %v241
    %243 = vmatmul.bf16.gmra.mxu0 %v143
    %v244 = vpop.f32.mrf.mxu0
    %v245 = vadd.f32 %v102, %v244
    %v246 = vpop.f32.mrf.mxu0
    %v247 = vadd.f32 %v102, %v246
    %248 = vdwg.mxu0
    %v249 = vmul.f32 %v210, 0.5
    %v250 = vmul.f32 %v212, 0.5
    %v251 = vmul.f32 %v215, 0.5
    %v252 = vmul.f32 %v217, 0.5
    %v253 = vmul.f32 %v220, 0.5
    %v254 = vmul.f32 %v222, 0.5
    %v255 = vmul.f32 %v225, 0.5
    %v256 = vmul.f32 %v227, 0.5
    %v257 = vmul.f32 %v230, 0.5
    %v258 = vmul.f32 %v232, 0.5
    %v259 = vmul.f32 %v235, 0.5
    %v260 = vmul.f32 %v237, 0.5
    %v261 = vmul.f32 %v240, 0.5
    %v262 = vmul.f32 %v242, 0.5
    %v263 = vmul.f32 %v245, 0.5
    %v264 = vmul.f32 %v247, 0.5
    %v265 = vmul.f32 %v210, 0.70710677
    %v266 = vmul.f32 %v212, 0.70710677
    %v267 = vmul.f32 %v215, 0.70710677
    %v268 = vmul.f32 %v217, 0.70710677
    %v269 = vmul.f32 %v220, 0.70710677
    %v270 = vmul.f32 %v222, 0.70710677
    %v271 = vmul.f32 %v225, 0.70710677
    %v272 = vmul.f32 %v227, 0.70710677
    %v273 = vmul.f32 %v230, 0.70710677
    %v274 = vmul.f32 %v232, 0.70710677
    %v275 = vmul.f32 %v235, 0.70710677
    %v276 = vmul.f32 %v237, 0.70710677
    %v277 = vmul.f32 %v240, 0.70710677
    %v278 = vmul.f32 %v242, 0.70710677
    %v279 = vmul.f32 %v245, 0.70710677
    %v280 = vmul.f32 %v247, 0.70710677
    %v281 = vmul.f32 %v265, %v265
    %v282 = vmin.f32 16.0, %v281
    %v283 = vmul.f32 %v282, 2.1237322e-06
    %v284 = vadd.f32 %v283, 0.00028619796
    %v285 = vmul.f32 %v282, %v284
    %v286 = vadd.f32 %v285, 0.0036580483
    %v287 = vmul.f32 %v282, %v286
    %v288 = vadd.f32 %v287, 0.05243302
    %v289 = vmul.f32 %v282, %v288
    %v290 = vadd.f32 %v289, 0.18741608
    %v291 = vmul.f32 %v282, %v290
    %v292 = vadd.f32 %v291, 1.1283791
    %v293 = vmul.f32 %v265, %v292
    %v294 = vmul.f32 %v282, 3.8918573e-05
    %v295 = vadd.f32 %v294, 0.001143296
    %v296 = vmul.f32 %v282, %v295
    %v297 = vadd.f32 %v296, 0.014752088
    %v298 = vmul.f32 %v282, %v297
    %v299 = vadd.f32 %v298, 0.112945676
    %v300 = vmul.f32 %v282, %v299
    %v301 = vadd.f32 %v300, 0.4994258
    %v302 = vmul.f32 %v282, %v301
    %v303 = vadd.f32 %v302, 1.0
    %v304 = vrcp.pop %v303
    %v305 = vmul.f32 %v303, %v304
    %v306 = vsub.f32 1.0, %v305
    %v307 = vmul.f32 %v304, %v306
    %v308 = vadd.f32 %v304, %v307
    %vm309 = vweird.f32 %v303
    %vm310 = vweird.f32 %v304
    %vm311 = vmor %vm309, %vm310
    %v312 = vsel %vm311, %v304, %v308
    %v313 = vand.u32 2147483647, %v303
    %vm314 = vcmp.eq.f32.partialorder %v313, 8.507059e+37
    %v315 = vand.u32 %v303, 2147483648
    %v316 = vor.u32 1.1754944e-38, %v315
    %v317 = vsel %vm314, %v316, %v312
    %v318 = vmul.f32 %v293, %v317
    %v319 = vmin.f32 %v318, 1.0
    %v320 = vmax.f32 %v319, -1.0
    %v321 = vmul.f32 %v266, %v266
    %v322 = vmin.f32 16.0, %v321
    %v323 = vmul.f32 %v322, 2.1237322e-06
    %v324 = vadd.f32 %v323, 0.00028619796
    %v325 = vmul.f32 %v322, %v324
    %v326 = vadd.f32 %v325, 0.0036580483
    %v327 = vmul.f32 %v322, %v326
    %v328 = vadd.f32 %v327, 0.05243302
    %v329 = vmul.f32 %v322, %v328
    %v330 = vadd.f32 %v329, 0.18741608
    %v331 = vmul.f32 %v322, %v330
    %v332 = vadd.f32 %v331, 1.1283791
    %v333 = vmul.f32 %v266, %v332
    %v334 = vmul.f32 %v322, 3.8918573e-05
    %v335 = vadd.f32 %v334, 0.001143296
    %v336 = vmul.f32 %v322, %v335
    %v337 = vadd.f32 %v336, 0.014752088
    %v338 = vmul.f32 %v322, %v337
    %v339 = vadd.f32 %v338, 0.112945676
    %v340 = vmul.f32 %v322, %v339
    %v341 = vadd.f32 %v340, 0.4994258
    %v342 = vmul.f32 %v322, %v341
    %v343 = vadd.f32 %v342, 1.0
    %v344 = vrcp.pop %v343
    %v345 = vmul.f32 %v343, %v344
    %v346 = vsub.f32 1.0, %v345
    %v347 = vmul.f32 %v344, %v346
    %v348 = vadd.f32 %v344, %v347
    %vm349 = vweird.f32 %v343
    %vm350 = vweird.f32 %v344
    %vm351 = vmor %vm349, %vm350
    %v352 = vsel %vm351, %v344, %v348
    %v353 = vand.u32 2147483647, %v343
    %vm354 = vcmp.eq.f32.partialorder %v353, 8.507059e+37
    %v355 = vand.u32 %v343, 2147483648
    %v356 = vor.u32 1.1754944e-38, %v355
    %v357 = vsel %vm354, %v356, %v352
    %v358 = vmul.f32 %v333, %v357
    %v359 = vmin.f32 %v358, 1.0
    %v360 = vmax.f32 %v359, -1.0
    %v361 = vmul.f32 %v267, %v267
    %v362 = vmin.f32 16.0, %v361
    %v363 = vmul.f32 %v362, 2.1237322e-06
    %v364 = vadd.f32 %v363, 0.00028619796
    %v365 = vmul.f32 %v362, %v364
    %v366 = vadd.f32 %v365, 0.0036580483
    %v367 = vmul.f32 %v362, %v366
    %v368 = vadd.f32 %v367, 0.05243302
    %v369 = vmul.f32 %v362, %v368
    %v370 = vadd.f32 %v369, 0.18741608
    %v371 = vmul.f32 %v362, %v370
    %v372 = vadd.f32 %v371, 1.1283791
    %v373 = vmul.f32 %v267, %v372
    %v374 = vmul.f32 %v362, 3.8918573e-05
    %v375 = vadd.f32 %v374, 0.001143296
    %v376 = vmul.f32 %v362, %v375
    %v377 = vadd.f32 %v376, 0.014752088
    %v378 = vmul.f32 %v362, %v377
    %v379 = vadd.f32 %v378, 0.112945676
    %v380 = vmul.f32 %v362, %v379
    %v381 = vadd.f32 %v380, 0.4994258
    %v382 = vmul.f32 %v362, %v381
    %v383 = vadd.f32 %v382, 1.0
    %v384 = vrcp.pop %v383
    %v385 = vmul.f32 %v383, %v384
    %v386 = vsub.f32 1.0, %v385
    %v387 = vmul.f32 %v384, %v386
    %v388 = vadd.f32 %v384, %v387
    %vm389 = vweird.f32 %v383
    %vm390 = vweird.f32 %v384
    %vm391 = vmor %vm389, %vm390
    %v392 = vsel %vm391, %v384, %v388
    %v393 = vand.u32 2147483647, %v383
    %vm394 = vcmp.eq.f32.partialorder %v393, 8.507059e+37
    %v395 = vand.u32 %v383, 2147483648
    %v396 = vor.u32 1.1754944e-38, %v395
    %v397 = vsel %vm394, %v396, %v392
    %v398 = vmul.f32 %v373, %v397
    %v399 = vmin.f32 %v398, 1.0
    %v400 = vmax.f32 %v399, -1.0
    %v401 = vmul.f32 %v268, %v268
    %v402 = vmin.f32 16.0, %v401
    %v403 = vmul.f32 %v402, 2.1237322e-06
    %v404 = vadd.f32 %v403, 0.00028619796
    %v405 = vmul.f32 %v402, %v404
    %v406 = vadd.f32 %v405, 0.0036580483
    %v407 = vmul.f32 %v402, %v406
    %v408 = vadd.f32 %v407, 0.05243302
    %v409 = vmul.f32 %v402, %v408
    %v410 = vadd.f32 %v409, 0.18741608
    %v411 = vmul.f32 %v402, %v410
    %v412 = vadd.f32 %v411, 1.1283791
    %v413 = vmul.f32 %v268, %v412
    %v414 = vmul.f32 %v402, 3.8918573e-05
    %v415 = vadd.f32 %v414, 0.001143296
    %v416 = vmul.f32 %v402, %v415
    %v417 = vadd.f32 %v416, 0.014752088
    %v418 = vmul.f32 %v402, %v417
    %v419 = vadd.f32 %v418, 0.112945676
    %v420 = vmul.f32 %v402, %v419
    %v421 = vadd.f32 %v420, 0.4994258
    %v422 = vmul.f32 %v402, %v421
    %v423 = vadd.f32 %v422, 1.0
    %v424 = vrcp.pop %v423
    %v425 = vmul.f32 %v423, %v424
    %v426 = vsub.f32 1.0, %v425
    %v427 = vmul.f32 %v424, %v426
    %v428 = vadd.f32 %v424, %v427
    %vm429 = vweird.f32 %v423
    %vm430 = vweird.f32 %v424
    %vm431 = vmor %vm429, %vm430
    %v432 = vsel %vm431, %v424, %v428
    %v433 = vand.u32 2147483647, %v423
    %vm434 = vcmp.eq.f32.partialorder %v433, 8.507059e+37
    %v435 = vand.u32 %v423, 2147483648
    %v436 = vor.u32 1.1754944e-38, %v435
    %v437 = vsel %vm434, %v436, %v432
    %v438 = vmul.f32 %v413, %v437
    %v439 = vmin.f32 %v438, 1.0
    %v440 = vmax.f32 %v439, -1.0
    %v441 = vmul.f32 %v269, %v269
    %v442 = vmin.f32 16.0, %v441
    %v443 = vmul.f32 %v442, 2.1237322e-06
    %v444 = vadd.f32 %v443, 0.00028619796
    %v445 = vmul.f32 %v442, %v444
    %v446 = vadd.f32 %v445, 0.0036580483
    %v447 = vmul.f32 %v442, %v446
    %v448 = vadd.f32 %v447, 0.05243302
    %v449 = vmul.f32 %v442, %v448
    %v450 = vadd.f32 %v449, 0.18741608
    %v451 = vmul.f32 %v442, %v450
    %v452 = vadd.f32 %v451, 1.1283791
    %v453 = vmul.f32 %v269, %v452
    %v454 = vmul.f32 %v442, 3.8918573e-05
    %v455 = vadd.f32 %v454, 0.001143296
    %v456 = vmul.f32 %v442, %v455
    %v457 = vadd.f32 %v456, 0.014752088
    %v458 = vmul.f32 %v442, %v457
    %v459 = vadd.f32 %v458, 0.112945676
    %v460 = vmul.f32 %v442, %v459
    %v461 = vadd.f32 %v460, 0.4994258
    %v462 = vmul.f32 %v442, %v461
    %v463 = vadd.f32 %v462, 1.0
    %v464 = vrcp.pop %v463
    %v465 = vmul.f32 %v463, %v464
    %v466 = vsub.f32 1.0, %v465
    %v467 = vmul.f32 %v464, %v466
    %v468 = vadd.f32 %v464, %v467
    %vm469 = vweird.f32 %v463
    %vm470 = vweird.f32 %v464
    %vm471 = vmor %vm469, %vm470
    %v472 = vsel %vm471, %v464, %v468
    %v473 = vand.u32 2147483647, %v463
    %vm474 = vcmp.eq.f32.partialorder %v473, 8.507059e+37
    %v475 = vand.u32 %v463, 2147483648
    %v476 = vor.u32 1.1754944e-38, %v475
    %v477 = vsel %vm474, %v476, %v472
    %v478 = vmul.f32 %v453, %v477
    %v479 = vmin.f32 %v478, 1.0
    %v480 = vmax.f32 %v479, -1.0
    %v481 = vmul.f32 %v270, %v270
    %v482 = vmin.f32 16.0, %v481
    %v483 = vmul.f32 %v482, 2.1237322e-06
    %v484 = vadd.f32 %v483, 0.00028619796
    %v485 = vmul.f32 %v482, %v484
    %v486 = vadd.f32 %v485, 0.0036580483
    %v487 = vmul.f32 %v482, %v486
    %v488 = vadd.f32 %v487, 0.05243302
    %v489 = vmul.f32 %v482, %v488
    %v490 = vadd.f32 %v489, 0.18741608
    %v491 = vmul.f32 %v482, %v490
    %v492 = vadd.f32 %v491, 1.1283791
    %v493 = vmul.f32 %v270, %v492
    %v494 = vmul.f32 %v482, 3.8918573e-05
    %v495 = vadd.f32 %v494, 0.001143296
    %v496 = vmul.f32 %v482, %v495
    %v497 = vadd.f32 %v496, 0.014752088
    %v498 = vmul.f32 %v482, %v497
    %v499 = vadd.f32 %v498, 0.112945676
    %v500 = vmul.f32 %v482, %v499
    %v501 = vadd.f32 %v500, 0.4994258
    %v502 = vmul.f32 %v482, %v501
    %v503 = vadd.f32 %v502, 1.0
    %v504 = vrcp.pop %v503
    %v505 = vmul.f32 %v503, %v504
    %v506 = vsub.f32 1.0, %v505
    %v507 = vmul.f32 %v504, %v506
    %v508 = vadd.f32 %v504, %v507
    %vm509 = vweird.f32 %v503
    %vm510 = vweird.f32 %v504
    %vm511 = vmor %vm509, %vm510
    %v512 = vsel %vm511, %v504, %v508
    %v513 = vand.u32 2147483647, %v503
    %vm514 = vcmp.eq.f32.partialorder %v513, 8.507059e+37
    %v515 = vand.u32 %v503, 2147483648
    %v516 = vor.u32 1.1754944e-38, %v515
    %v517 = vsel %vm514, %v516, %v512
    %v518 = vmul.f32 %v493, %v517
    %v519 = vmin.f32 %v518, 1.0
    %v520 = vmax.f32 %v519, -1.0
    %v521 = vmul.f32 %v271, %v271
    %v522 = vmin.f32 16.0, %v521
    %v523 = vmul.f32 %v522, 2.1237322e-06
    %v524 = vadd.f32 %v523, 0.00028619796
    %v525 = vmul.f32 %v522, %v524
    %v526 = vadd.f32 %v525, 0.0036580483
    %v527 = vmul.f32 %v522, %v526
    %v528 = vadd.f32 %v527, 0.05243302
    %v529 = vmul.f32 %v522, %v528
    %v530 = vadd.f32 %v529, 0.18741608
    %v531 = vmul.f32 %v522, %v530
    %v532 = vadd.f32 %v531, 1.1283791
    %v533 = vmul.f32 %v271, %v532
    %v534 = vmul.f32 %v522, 3.8918573e-05
    %v535 = vadd.f32 %v534, 0.001143296
    %v536 = vmul.f32 %v522, %v535
    %v537 = vadd.f32 %v536, 0.014752088
    %v538 = vmul.f32 %v522, %v537
    %v539 = vadd.f32 %v538, 0.112945676
    %v540 = vmul.f32 %v522, %v539
    %v541 = vadd.f32 %v540, 0.4994258
    %v542 = vmul.f32 %v522, %v541
    %v543 = vadd.f32 %v542, 1.0
    %v544 = vrcp.pop %v543
    %v545 = vmul.f32 %v543, %v544
    %v546 = vsub.f32 1.0, %v545
    %v547 = vmul.f32 %v544, %v546
    %v548 = vadd.f32 %v544, %v547
    %vm549 = vweird.f32 %v543
    %vm550 = vweird.f32 %v544
    %vm551 = vmor %vm549, %vm550
    %v552 = vsel %vm551, %v544, %v548
    %v553 = vand.u32 2147483647, %v543
    %vm554 = vcmp.eq.f32.partialorder %v553, 8.507059e+37
    %v555 = vand.u32 %v543, 2147483648
    %v556 = vor.u32 1.1754944e-38, %v555
    %v557 = vsel %vm554, %v556, %v552
    %v558 = vmul.f32 %v533, %v557
    %v559 = vmin.f32 %v558, 1.0
    %v560 = vmax.f32 %v559, -1.0
    %v561 = vmul.f32 %v272, %v272
    %v562 = vmin.f32 16.0, %v561
    %v563 = vmul.f32 %v562, 2.1237322e-06
    %v564 = vadd.f32 %v563, 0.00028619796
    %v565 = vmul.f32 %v562, %v564
    %v566 = vadd.f32 %v565, 0.0036580483
    %v567 = vmul.f32 %v562, %v566
    %v568 = vadd.f32 %v567, 0.05243302
    %v569 = vmul.f32 %v562, %v568
    %v570 = vadd.f32 %v569, 0.18741608
    %v571 = vmul.f32 %v562, %v570
    %v572 = vadd.f32 %v571, 1.1283791
    %v573 = vmul.f32 %v272, %v572
    %v574 = vmul.f32 %v562, 3.8918573e-05
    %v575 = vadd.f32 %v574, 0.001143296
    %v576 = vmul.f32 %v562, %v575
    %v577 = vadd.f32 %v576, 0.014752088
    %v578 = vmul.f32 %v562, %v577
    %v579 = vadd.f32 %v578, 0.112945676
    %v580 = vmul.f32 %v562, %v579
    %v581 = vadd.f32 %v580, 0.4994258
    %v582 = vmul.f32 %v562, %v581
    %v583 = vadd.f32 %v582, 1.0
    %v584 = vrcp.pop %v583
    %v585 = vmul.f32 %v583, %v584
    %v586 = vsub.f32 1.0, %v585
    %v587 = vmul.f32 %v584, %v586
    %v588 = vadd.f32 %v584, %v587
    %vm589 = vweird.f32 %v583
    %vm590 = vweird.f32 %v584
    %vm591 = vmor %vm589, %vm590
    %v592 = vsel %vm591, %v584, %v588
    %v593 = vand.u32 2147483647, %v583
    %vm594 = vcmp.eq.f32.partialorder %v593, 8.507059e+37
    %v595 = vand.u32 %v583, 2147483648
    %v596 = vor.u32 1.1754944e-38, %v595
    %v597 = vsel %vm594, %v596, %v592
    %v598 = vmul.f32 %v573, %v597
    %v599 = vmin.f32 %v598, 1.0
    %v600 = vmax.f32 %v599, -1.0
    %v601 = vmul.f32 %v273, %v273
    %v602 = vmin.f32 16.0, %v601
    %v603 = vmul.f32 %v602, 2.1237322e-06
    %v604 = vadd.f32 %v603, 0.00028619796
    %v605 = vmul.f32 %v602, %v604
    %v606 = vadd.f32 %v605, 0.0036580483
    %v607 = vmul.f32 %v602, %v606
    %v608 = vadd.f32 %v607, 0.05243302
    %v609 = vmul.f32 %v602, %v608
    %v610 = vadd.f32 %v609, 0.18741608
    %v611 = vmul.f32 %v602, %v610
    %v612 = vadd.f32 %v611, 1.1283791
    %v613 = vmul.f32 %v273, %v612
    %v614 = vmul.f32 %v602, 3.8918573e-05
    %v615 = vadd.f32 %v614, 0.001143296
    %v616 = vmul.f32 %v602, %v615
    %v617 = vadd.f32 %v616, 0.014752088
    %v618 = vmul.f32 %v602, %v617
    %v619 = vadd.f32 %v618, 0.112945676
    %v620 = vmul.f32 %v602, %v619
    %v621 = vadd.f32 %v620, 0.4994258
    %v622 = vmul.f32 %v602, %v621
    %v623 = vadd.f32 %v622, 1.0
    %v624 = vrcp.pop %v623
    %v625 = vmul.f32 %v623, %v624
    %v626 = vsub.f32 1.0, %v625
    %v627 = vmul.f32 %v624, %v626
    %v628 = vadd.f32 %v624, %v627
    %vm629 = vweird.f32 %v623
    %vm630 = vweird.f32 %v624
    %vm631 = vmor %vm629, %vm630
    %v632 = vsel %vm631, %v624, %v628
    %v633 = vand.u32 2147483647, %v623
    %vm634 = vcmp.eq.f32.partialorder %v633, 8.507059e+37
    %v635 = vand.u32 %v623, 2147483648
    %v636 = vor.u32 1.1754944e-38, %v635
    %v637 = vsel %vm634, %v636, %v632
    %v638 = vmul.f32 %v613, %v637
    %v639 = vmin.f32 %v638, 1.0
    %v640 = vmax.f32 %v639, -1.0
    %v641 = vmul.f32 %v274, %v274
    %v642 = vmin.f32 16.0, %v641
    %v643 = vmul.f32 %v642, 2.1237322e-06
    %v644 = vadd.f32 %v643, 0.00028619796
    %v645 = vmul.f32 %v642, %v644
    %v646 = vadd.f32 %v645, 0.0036580483
    %v647 = vmul.f32 %v642, %v646
    %v648 = vadd.f32 %v647, 0.05243302
    %v649 = vmul.f32 %v642, %v648
    %v650 = vadd.f32 %v649, 0.18741608
    %v651 = vmul.f32 %v642, %v650
    %v652 = vadd.f32 %v651, 1.1283791
    %v653 = vmul.f32 %v274, %v652
    %v654 = vmul.f32 %v642, 3.8918573e-05
    %v655 = vadd.f32 %v654, 0.001143296
    %v656 = vmul.f32 %v642, %v655
    %v657 = vadd.f32 %v656, 0.014752088
    %v658 = vmul.f32 %v642, %v657
    %v659 = vadd.f32 %v658, 0.112945676
    %v660 = vmul.f32 %v642, %v659
    %v661 = vadd.f32 %v660, 0.4994258
    %v662 = vmul.f32 %v642, %v661
    %v663 = vadd.f32 %v662, 1.0
    %v664 = vrcp.pop %v663
    %v665 = vmul.f32 %v663, %v664
    %v666 = vsub.f32 1.0, %v665
    %v667 = vmul.f32 %v664, %v666
    %v668 = vadd.f32 %v664, %v667
    %vm669 = vweird.f32 %v663
    %vm670 = vweird.f32 %v664
    %vm671 = vmor %vm669, %vm670
    %v672 = vsel %vm671, %v664, %v668
    %v673 = vand.u32 2147483647, %v663
    %vm674 = vcmp.eq.f32.partialorder %v673, 8.507059e+37
    %v675 = vand.u32 %v663, 2147483648
    %v676 = vor.u32 1.1754944e-38, %v675
    %v677 = vsel %vm674, %v676, %v672
    %v678 = vmul.f32 %v653, %v677
    %v679 = vmin.f32 %v678, 1.0
    %v680 = vmax.f32 %v679, -1.0
    %v681 = vmul.f32 %v275, %v275
    %v682 = vmin.f32 16.0, %v681
    %v683 = vmul.f32 %v682, 2.1237322e-06
    %v684 = vadd.f32 %v683, 0.00028619796
    %v685 = vmul.f32 %v682, %v684
    %v686 = vadd.f32 %v685, 0.0036580483
    %v687 = vmul.f32 %v682, %v686
    %v688 = vadd.f32 %v687, 0.05243302
    %v689 = vmul.f32 %v682, %v688
    %v690 = vadd.f32 %v689, 0.18741608
    %v691 = vmul.f32 %v682, %v690
    %v692 = vadd.f32 %v691, 1.1283791
    %v693 = vmul.f32 %v275, %v692
    %v694 = vmul.f32 %v682, 3.8918573e-05
    %v695 = vadd.f32 %v694, 0.001143296
    %v696 = vmul.f32 %v682, %v695
    %v697 = vadd.f32 %v696, 0.014752088
    %v698 = vmul.f32 %v682, %v697
    %v699 = vadd.f32 %v698, 0.112945676
    %v700 = vmul.f32 %v682, %v699
    %v701 = vadd.f32 %v700, 0.4994258
    %v702 = vmul.f32 %v682, %v701
    %v703 = vadd.f32 %v702, 1.0
    %v704 = vrcp.pop %v703
    %v705 = vmul.f32 %v703, %v704
    %v706 = vsub.f32 1.0, %v705
    %v707 = vmul.f32 %v704, %v706
    %v708 = vadd.f32 %v704, %v707
    %vm709 = vweird.f32 %v703
    %vm710 = vweird.f32 %v704
    %vm711 = vmor %vm709, %vm710
    %v712 = vsel %vm711, %v704, %v708
    %v713 = vand.u32 2147483647, %v703
    %vm714 = vcmp.eq.f32.partialorder %v713, 8.507059e+37
    %v715 = vand.u32 %v703, 2147483648
    %v716 = vor.u32 1.1754944e-38, %v715
    %v717 = vsel %vm714, %v716, %v712
    %v718 = vmul.f32 %v693, %v717
    %v719 = vmin.f32 %v718, 1.0
    %v720 = vmax.f32 %v719, -1.0
    %v721 = vmul.f32 %v276, %v276
    %v722 = vmin.f32 16.0, %v721
    %v723 = vmul.f32 %v722, 2.1237322e-06
    %v724 = vadd.f32 %v723, 0.00028619796
    %v725 = vmul.f32 %v722, %v724
    %v726 = vadd.f32 %v725, 0.0036580483
    %v727 = vmul.f32 %v722, %v726
    %v728 = vadd.f32 %v727, 0.05243302
    %v729 = vmul.f32 %v722, %v728
    %v730 = vadd.f32 %v729, 0.18741608
    %v731 = vmul.f32 %v722, %v730
    %v732 = vadd.f32 %v731, 1.1283791
    %v733 = vmul.f32 %v276, %v732
    %v734 = vmul.f32 %v722, 3.8918573e-05
    %v735 = vadd.f32 %v734, 0.001143296
    %v736 = vmul.f32 %v722, %v735
    %v737 = vadd.f32 %v736, 0.014752088
    %v738 = vmul.f32 %v722, %v737
    %v739 = vadd.f32 %v738, 0.112945676
    %v740 = vmul.f32 %v722, %v739
    %v741 = vadd.f32 %v740, 0.4994258
    %v742 = vmul.f32 %v722, %v741
    %v743 = vadd.f32 %v742, 1.0
    %v744 = vrcp.pop %v743
    %v745 = vmul.f32 %v743, %v744
    %v746 = vsub.f32 1.0, %v745
    %v747 = vmul.f32 %v744, %v746
    %v748 = vadd.f32 %v744, %v747
    %vm749 = vweird.f32 %v743
    %vm750 = vweird.f32 %v744
    %vm751 = vmor %vm749, %vm750
    %v752 = vsel %vm751, %v744, %v748
    %v753 = vand.u32 2147483647, %v743
    %vm754 = vcmp.eq.f32.partialorder %v753, 8.507059e+37
    %v755 = vand.u32 %v743, 2147483648
    %v756 = vor.u32 1.1754944e-38, %v755
    %v757 = vsel %vm754, %v756, %v752
    %v758 = vmul.f32 %v733, %v757
    %v759 = vmin.f32 %v758, 1.0
    %v760 = vmax.f32 %v759, -1.0
    %v761 = vmul.f32 %v277, %v277
    %v762 = vmin.f32 16.0, %v761
    %v763 = vmul.f32 %v762, 2.1237322e-06
    %v764 = vadd.f32 %v763, 0.00028619796
    %v765 = vmul.f32 %v762, %v764
    %v766 = vadd.f32 %v765, 0.0036580483
    %v767 = vmul.f32 %v762, %v766
    %v768 = vadd.f32 %v767, 0.05243302
    %v769 = vmul.f32 %v762, %v768
    %v770 = vadd.f32 %v769, 0.18741608
    %v771 = vmul.f32 %v762, %v770
    %v772 = vadd.f32 %v771, 1.1283791
    %v773 = vmul.f32 %v277, %v772
    %v774 = vmul.f32 %v762, 3.8918573e-05
    %v775 = vadd.f32 %v774, 0.001143296
    %v776 = vmul.f32 %v762, %v775
    %v777 = vadd.f32 %v776, 0.014752088
    %v778 = vmul.f32 %v762, %v777
    %v779 = vadd.f32 %v778, 0.112945676
    %v780 = vmul.f32 %v762, %v779
    %v781 = vadd.f32 %v780, 0.4994258
    %v782 = vmul.f32 %v762, %v781
    %v783 = vadd.f32 %v782, 1.0
    %v784 = vrcp.pop %v783
    %v785 = vmul.f32 %v783, %v784
    %v786 = vsub.f32 1.0, %v785
    %v787 = vmul.f32 %v784, %v786
    %v788 = vadd.f32 %v784, %v787
    %vm789 = vweird.f32 %v783
    %vm790 = vweird.f32 %v784
    %vm791 = vmor %vm789, %vm790
    %v792 = vsel %vm791, %v784, %v788
    %v793 = vand.u32 2147483647, %v783
    %vm794 = vcmp.eq.f32.partialorder %v793, 8.507059e+37
    %v795 = vand.u32 %v783, 2147483648
    %v796 = vor.u32 1.1754944e-38, %v795
    %v797 = vsel %vm794, %v796, %v792
    %v798 = vmul.f32 %v773, %v797
    %v799 = vmin.f32 %v798, 1.0
    %v800 = vmax.f32 %v799, -1.0
    %v801 = vmul.f32 %v278, %v278
    %v802 = vmin.f32 16.0, %v801
    %v803 = vmul.f32 %v802, 2.1237322e-06
    %v804 = vadd.f32 %v803, 0.00028619796
    %v805 = vmul.f32 %v802, %v804
    %v806 = vadd.f32 %v805, 0.0036580483
    %v807 = vmul.f32 %v802, %v806
    %v808 = vadd.f32 %v807, 0.05243302
    %v809 = vmul.f32 %v802, %v808
    %v810 = vadd.f32 %v809, 0.18741608
    %v811 = vmul.f32 %v802, %v810
    %v812 = vadd.f32 %v811, 1.1283791
    %v813 = vmul.f32 %v278, %v812
    %v814 = vmul.f32 %v802, 3.8918573e-05
    %v815 = vadd.f32 %v814, 0.001143296
    %v816 = vmul.f32 %v802, %v815
    %v817 = vadd.f32 %v816, 0.014752088
    %v818 = vmul.f32 %v802, %v817
    %v819 = vadd.f32 %v818, 0.112945676
    %v820 = vmul.f32 %v802, %v819
    %v821 = vadd.f32 %v820, 0.4994258
    %v822 = vmul.f32 %v802, %v821
    %v823 = vadd.f32 %v822, 1.0
    %v824 = vrcp.pop %v823
    %v825 = vmul.f32 %v823, %v824
    %v826 = vsub.f32 1.0, %v825
    %v827 = vmul.f32 %v824, %v826
    %v828 = vadd.f32 %v824, %v827
    %vm829 = vweird.f32 %v823
    %vm830 = vweird.f32 %v824
    %vm831 = vmor %vm829, %vm830
    %v832 = vsel %vm831, %v824, %v828
    %v833 = vand.u32 2147483647, %v823
    %vm834 = vcmp.eq.f32.partialorder %v833, 8.507059e+37
    %v835 = vand.u32 %v823, 2147483648
    %v836 = vor.u32 1.1754944e-38, %v835
    %v837 = vsel %vm834, %v836, %v832
    %v838 = vmul.f32 %v813, %v837
    %v839 = vmin.f32 %v838, 1.0
    %v840 = vmax.f32 %v839, -1.0
    %v841 = vmul.f32 %v279, %v279
    %v842 = vmin.f32 16.0, %v841
    %v843 = vmul.f32 %v842, 2.1237322e-06
    %v844 = vadd.f32 %v843, 0.00028619796
    %v845 = vmul.f32 %v842, %v844
    %v846 = vadd.f32 %v845, 0.0036580483
    %v847 = vmul.f32 %v842, %v846
    %v848 = vadd.f32 %v847, 0.05243302
    %v849 = vmul.f32 %v842, %v848
    %v850 = vadd.f32 %v849, 0.18741608
    %v851 = vmul.f32 %v842, %v850
    %v852 = vadd.f32 %v851, 1.1283791
    %v853 = vmul.f32 %v279, %v852
    %v854 = vmul.f32 %v842, 3.8918573e-05
    %v855 = vadd.f32 %v854, 0.001143296
    %v856 = vmul.f32 %v842, %v855
    %v857 = vadd.f32 %v856, 0.014752088
    %v858 = vmul.f32 %v842, %v857
    %v859 = vadd.f32 %v858, 0.112945676
    %v860 = vmul.f32 %v842, %v859
    %v861 = vadd.f32 %v860, 0.4994258
    %v862 = vmul.f32 %v842, %v861
    %v863 = vadd.f32 %v862, 1.0
    %v864 = vrcp.pop %v863
    %v865 = vmul.f32 %v863, %v864
    %v866 = vsub.f32 1.0, %v865
    %v867 = vmul.f32 %v864, %v866
    %v868 = vadd.f32 %v864, %v867
    %vm869 = vweird.f32 %v863
    %vm870 = vweird.f32 %v864
    %vm871 = vmor %vm869, %vm870
    %v872 = vsel %vm871, %v864, %v868
    %v873 = vand.u32 2147483647, %v863
    %vm874 = vcmp.eq.f32.partialorder %v873, 8.507059e+37
    %v875 = vand.u32 %v863, 2147483648
    %v876 = vor.u32 1.1754944e-38, %v875
    %v877 = vsel %vm874, %v876, %v872
    %v878 = vmul.f32 %v853, %v877
    %v879 = vmin.f32 %v878, 1.0
    %v880 = vmax.f32 %v879, -1.0
    %v881 = vmul.f32 %v280, %v280
    %v882 = vmin.f32 16.0, %v881
    %v883 = vmul.f32 %v882, 2.1237322e-06
    %v884 = vadd.f32 %v883, 0.00028619796
    %v885 = vmul.f32 %v882, %v884
    %v886 = vadd.f32 %v885, 0.0036580483
    %v887 = vmul.f32 %v882, %v886
    %v888 = vadd.f32 %v887, 0.05243302
    %v889 = vmul.f32 %v882, %v888
    %v890 = vadd.f32 %v889, 0.18741608
    %v891 = vmul.f32 %v882, %v890
    %v892 = vadd.f32 %v891, 1.1283791
    %v893 = vmul.f32 %v280, %v892
    %v894 = vmul.f32 %v882, 3.8918573e-05
    %v895 = vadd.f32 %v894, 0.001143296
    %v896 = vmul.f32 %v882, %v895
    %v897 = vadd.f32 %v896, 0.014752088
    %v898 = vmul.f32 %v882, %v897
    %v899 = vadd.f32 %v898, 0.112945676
    %v900 = vmul.f32 %v882, %v899
    %v901 = vadd.f32 %v900, 0.4994258
    %v902 = vmul.f32 %v882, %v901
    %v903 = vadd.f32 %v902, 1.0
    %v904 = vrcp.pop %v903
    %v905 = vmul.f32 %v903, %v904
    %v906 = vsub.f32 1.0, %v905
    %v907 = vmul.f32 %v904, %v906
    %v908 = vadd.f32 %v904, %v907
    %vm909 = vweird.f32 %v903
    %vm910 = vweird.f32 %v904
    %vm911 = vmor %vm909, %vm910
    %v912 = vsel %vm911, %v904, %v908
    %v913 = vand.u32 2147483647, %v903
    %vm914 = vcmp.eq.f32.partialorder %v913, 8.507059e+37
    %v915 = vand.u32 %v903, 2147483648
    %v916 = vor.u32 1.1754944e-38, %v915
    %v917 = vsel %vm914, %v916, %v912
    %v918 = vmul.f32 %v893, %v917
    %v919 = vmin.f32 %v918, 1.0
    %v920 = vmax.f32 %v919, -1.0
    %v921 = vadd.f32 %v320, 1.0
    %v922 = vadd.f32 %v360, 1.0
    %v923 = vadd.f32 %v400, 1.0
    %v924 = vadd.f32 %v440, 1.0
    %v925 = vadd.f32 %v480, 1.0
    %v926 = vadd.f32 %v520, 1.0
    %v927 = vadd.f32 %v560, 1.0
    %v928 = vadd.f32 %v600, 1.0
    %v929 = vadd.f32 %v640, 1.0
    %v930 = vadd.f32 %v680, 1.0
    %v931 = vadd.f32 %v720, 1.0
    %v932 = vadd.f32 %v760, 1.0
    %v933 = vadd.f32 %v800, 1.0
    %v934 = vadd.f32 %v840, 1.0
    %v935 = vadd.f32 %v880, 1.0
    %v936 = vadd.f32 %v920, 1.0
    %v937 = vmul.f32 %v249, %v921
    %v938 = vmul.f32 %v250, %v922
    %v939 = vmul.f32 %v251, %v923
    %v940 = vmul.f32 %v252, %v924
    %v941 = vmul.f32 %v253, %v925
    %v942 = vmul.f32 %v254, %v926
    %v943 = vmul.f32 %v255, %v927
    %v944 = vmul.f32 %v256, %v928
    %v945 = vmul.f32 %v257, %v929
    %v946 = vmul.f32 %v258, %v930
    %v947 = vmul.f32 %v259, %v931
    %v948 = vmul.f32 %v260, %v932
    %v949 = vmul.f32 %v261, %v933
    %v950 = vmul.f32 %v262, %v934
    %v951 = vmul.f32 %v263, %v935
    %v952 = vmul.f32 %v264, %v936
    %v953 = vpack.c.bf16 %v938, %v937
    %v954 = vpack.c.bf16 %v940, %v939
    %v955 = vpack.c.bf16 %v942, %v941
    %v956 = vpack.c.bf16 %v944, %v943
    %v957 = vpack.c.bf16 %v946, %v945
    %v958 = vpack.c.bf16 %v948, %v947
    %v959 = vpack.c.bf16 %v950, %v949
    %v960 = vpack.c.bf16 %v952, %v951
    %v961 = vld [vmem:[#allocation7] sm:$0xf]
    %v962 = vld [vmem:[#allocation7 + $0x4] sm:$0xf]
    %v963 = vld [vmem:[#allocation7 + $0x8] sm:$0xf]
    %v964 = vld [vmem:[#allocation7 + $0xc] sm:$0xf]
    %v965 = vld [vmem:[#allocation7 + $0x10] sm:$0xf]
    %v966 = vld [vmem:[#allocation7 + $0x14] sm:$0xf]
    %v967 = vld [vmem:[#allocation7 + $0x18] sm:$0xf]
    %v968 = vld [vmem:[#allocation7 + $0x1c] sm:$0xf]
    %v969 = vld [vmem:[#allocation7 + $0x20] sm:$0xf]
    %v970 = vld [vmem:[#allocation7 + $0x24] sm:$0xf]
    %v971 = vld [vmem:[#allocation7 + $0x28] sm:$0xf]
    %v972 = vld [vmem:[#allocation7 + $0x2c] sm:$0xf]
    %v973 = vld [vmem:[#allocation7 + $0x30] sm:$0xf]
    %v974 = vld [vmem:[#allocation7 + $0x34] sm:$0xf]
    %v975 = vld [vmem:[#allocation7 + $0x38] sm:$0xf]
    %v976 = vld [vmem:[#allocation7 + $0x3c] sm:$0xf]
    %v977 = vld [vmem:[%s4] sm:$0x1]
    %v979 = vperm.slane %v977, 0
    %v997 = vunpack.c.l.b16 %v961
    %v998 = vunpack.c.l.b16 %v962
    %v999 = vunpack.c.l.b16 %v963
    %v1000 = vunpack.c.l.b16 %v964
    %v1001 = vunpack.c.l.b16 %v965
    %v1002 = vunpack.c.l.b16 %v966
    %v1003 = vunpack.c.l.b16 %v967
    %v1004 = vunpack.c.l.b16 %v968
    %v1005 = vunpack.c.l.b16 %v969
    %v1006 = vunpack.c.l.b16 %v970
    %v1007 = vunpack.c.l.b16 %v971
    %v1008 = vunpack.c.l.b16 %v972
    %v1009 = vunpack.c.l.b16 %v973
    %v1010 = vunpack.c.l.b16 %v974
    %v1011 = vunpack.c.l.b16 %v975
    %v1012 = vunpack.c.l.b16 %v976
    %v1013 = vpack.c.b16 %v998, %v997
    %v1014 = vpack.c.b16 %v1000, %v999
    %v1015 = vpack.c.b16 %v1002, %v1001
    %v1016 = vpack.c.b16 %v1004, %v1003
    %v1017 = vpack.c.b16 %v1006, %v1005
    %v1018 = vpack.c.b16 %v1008, %v1007
    %v1019 = vpack.c.b16 %v1010, %v1009
    %v1020 = vpack.c.b16 %v1012, %v1011
    %1029 = vmatpush.bf16.msra.mxu0 %v1020
    %1030 = vmatpush.bf16.msra.mxu0 %v1019
    %1031 = vmatpush.bf16.msra.mxu0 %v1018
    %1032 = vmatpush.bf16.msra.mxu0 %v1017
    %1033 = vmatpush.bf16.msra.mxu0 %v1016
    %1034 = vmatpush.bf16.msra.mxu0 %v1015
    %1035 = vmatpush.bf16.msra.mxu0 %v1014
    %1036 = vmatpush.bf16.msra.mxu0 %v1013
    %1037 = vmatmul.bf16.gmra.mxu0 %v953
    %v1038 = vpop.f32.mrf.mxu0
    %v1039 = vadd.f32 %v979, %v1038
    %v1040 = vpop.f32.mrf.mxu0
    %v1041 = vadd.f32 %v979, %v1040
    %1042 = vmatmul.bf16.gmra.mxu0 %v954
    %v1043 = vpop.f32.mrf.mxu0
    %v1044 = vadd.f32 %v979, %v1043
    %v1045 = vpop.f32.mrf.mxu0
    %v1046 = vadd.f32 %v979, %v1045
    %1047 = vmatmul.bf16.gmra.mxu0 %v955
    %v1048 = vpop.f32.mrf.mxu0
    %v1049 = vadd.f32 %v979, %v1048
    %v1050 = vpop.f32.mrf.mxu0
    %v1051 = vadd.f32 %v979, %v1050
    %1052 = vmatmul.bf16.gmra.mxu0 %v956
    %v1053 = vpop.f32.mrf.mxu0
    %v1054 = vadd.f32 %v979, %v1053
    %v1055 = vpop.f32.mrf.mxu0
    %v1056 = vadd.f32 %v979, %v1055
    %1057 = vmatmul.bf16.gmra.mxu0 %v957
    %v1058 = vpop.f32.mrf.mxu0
    %v1059 = vadd.f32 %v979, %v1058
    %v1060 = vpop.f32.mrf.mxu0
    %v1061 = vadd.f32 %v979, %v1060
    %1062 = vmatmul.bf16.gmra.mxu0 %v958
    %v1063 = vpop.f32.mrf.mxu0
    %v1064 = vadd.f32 %v979, %v1063
    %v1065 = vpop.f32.mrf.mxu0
    %v1066 = vadd.f32 %v979, %v1065
    %1067 = vmatmul.bf16.gmra.mxu0 %v959
    %v1068 = vpop.f32.mrf.mxu0
    %v1069 = vadd.f32 %v979, %v1068
    %v1070 = vpop.f32.mrf.mxu0
    %v1071 = vadd.f32 %v979, %v1070
    %1072 = vmatmul.bf16.gmra.mxu0 %v960
    %v1073 = vpop.f32.mrf.mxu0
    %v1074 = vadd.f32 %v979, %v1073
    %v1075 = vpop.f32.mrf.mxu0
    %v1076 = vadd.f32 %v979, %v1075
    %1077 = vdwg.mxu0
    %1078 = vst [vmem:[#allocation8] sm:$0xff] %v1039
    %1079 = vst [vmem:[#allocation8 + $0x8] sm:$0xff] %v1041
    %1080 = vst [vmem:[#allocation8 + $0x10] sm:$0xff] %v1044
    %1081 = vst [vmem:[#allocation8 + $0x18] sm:$0xff] %v1046
    %1082 = vst [vmem:[#allocation8 + $0x20] sm:$0xff] %v1049
    %1083 = vst [vmem:[#allocation8 + $0x28] sm:$0xff] %v1051
    %1084 = vst [vmem:[#allocation8 + $0x30] sm:$0xff] %v1054
    %1085 = vst [vmem:[#allocation8 + $0x38] sm:$0xff] %v1056
    %1086 = vst [vmem:[#allocation8 + $0x40] sm:$0xff] %v1059
    %1087 = vst [vmem:[#allocation8 + $0x48] sm:$0xff] %v1061
    %1088 = vst [vmem:[#allocation8 + $0x50] sm:$0xff] %v1064
    %1089 = vst [vmem:[#allocation8 + $0x58] sm:$0xff] %v1066
    %1090 = vst [vmem:[#allocation8 + $0x60] sm:$0xff] %v1069
    %1091 = vst [vmem:[#allocation8 + $0x68] sm:$0xff] %v1071
    %1092 = vst [vmem:[#allocation8 + $0x70] sm:$0xff] %v1074
    %1093 = vst [vmem:[#allocation8 + $0x78] sm:$0xff] %v1076
    // Predicated region
    $region34: #{tpu_custom_call.1} parent=1 // pred_check
      _
    $region35: #{tpu_custom_call.1} parent=1 // pred_check_branch
      %1095 = sbr.rel (0) target = $region37
    $region36: #{tpu_custom_call.1} parent=1 // pred_region
      %1097 = vsyncadd [#allocation4], 0
      %s1098 = sshll.u32 [#allocation8], 4
      %s1099 = int_to_ptr.vmem [resolvable:$true] %s1098
      %s1100 = sshll.u32 %s5, 4
      %s1101 = int_to_ptr.hbm [resolvable:$true] %s1100
      %1106 = dma.vmem_to_hbm [thread:$0]  %s1099, 2048, %s1101, [#allocation4], 128, 128, 8
    $region37: #{tpu_custom_call.1} parent=1 // pred_fallthru
      _
    // Predicated region
    $region38: #{tpu_custom_call.1} parent=1 // pred_check
      _
    $region39: #{tpu_custom_call.1} parent=1 // pred_check_branch
      %1108 = sbr.rel (0) target = $region41
    $region40: #{tpu_custom_call.1} parent=1 // pred_region
      %1110 = dma.done [#allocation4], 2048
    $region41: #{tpu_custom_call.1} parent=1 // pred_fallthru
      _
    %1111 = vsyncpa [#allocation3], 1
    %1112 = vsyncpa [#allocation6], 1
    %1113 = vsyncpa [#allocation4], 1

</llo_original>
